<compile_context>
chip_gen: v5e
topology: v5e:2x2
jax: 0.10.0
libtpu: 0.0.40
codegen_flags: <defaults>
</compile_context>

<pallas_src>
import numpy as np
import jax
import jax.numpy as jnp
from jax.experimental import pallas as pl
from jax.experimental.pallas import tpu as pltpu


# ----------------------------- Pallas kernels ------------------------------

def _mask_kernel(x_ref, m_ref, o_ref):
    # x_ref: (TC, TW) tile of packed planes; m_ref: (1, TW) f32 mask row.
    x = x_ref[...].astype(jnp.float32)
    o_ref[...] = (x * m_ref[...]).astype(o_ref.dtype)


def _mask_offset_kernel(x_ref, m_ref, b_ref, o_ref):
    # b_ref holds the prefolded blend term offset * (1 - mask), float32.
    x = x_ref[...].astype(jnp.float32)
    o_ref[...] = (x * m_ref[...] + b_ref[...]).astype(o_ref.dtype)


# ------------------------------ sizing helpers ------------------------------

def _vmem_capacity_bytes():
    try:
        return int(pltpu.get_tpu_info().vmem_capacity_bytes)
    except Exception:
        return 64 * 1024 * 1024  # conservative fallback (v7x-class)


def _block_target_bytes(vmem_cap):
    # v7x has 64 MiB VMEM/TC -> keep blocks ~4 MiB; v5e/v6e (128 MiB) -> ~8 MiB.
    if vmem_cap <= 96 * 1024 * 1024:
        return 4 * 1024 * 1024
    return 8 * 1024 * 1024


def _pack_factor(num_planes, hw):
    """Pack k consecutive planes per row when H*W is small so the lane dim is wide."""
    if hw >= 2048:
        return 1
    best = 1
    for k in range(1, num_planes + 1):
        if num_planes % k == 0 and k * hw <= 8192:
            best = k
            if k * hw >= 2048:
                break
    return best


def _choose_tiles(rows, width, itemsize, target_bytes):
    """Pick (TC, TW): <= target_bytes per block, lane-dense, (8,128)-legal."""
    sub = 8 * max(1, 4 // itemsize)          # 8 (f32) / 16 (bf16) / 32 (i8)
    if width * itemsize * sub <= target_bytes:
        tw = width                           # full extent on last dim -> legal
        tc_raw = target_bytes // (tw * itemsize)
        if tc_raw >= rows:
            tc = rows                        # full extent on leading dim -> legal
        else:
            tc = min(rows, max(sub, (tc_raw // sub) * sub))
    else:
        # Even `sub` full rows exceed the target: chunk lanes instead of
        # ballooning the block (previous version grew to 8-16 MiB for bf16/i8).
        tc = rows if rows < sub else sub
        lane_budget = target_bytes // (tc * itemsize)
        tw = min(width, max(128, (lane_budget // 128) * 128))
    return tc, tw


def _maybe_split_for_cores(rows, width, tc, tw, itemsize, min_steps=4):
    """Force >=min_steps grid steps when there is enough work (dual-TC chips)."""
    total = rows * width * itemsize
    if total < 8 * 1024 * 1024:              # too little work; splitting is overhead
        return tc, tw
    sub = 8 * max(1, 4 // itemsize)
    steps = pl.cdiv(rows, tc) * pl.cdiv(width, tw)
    if steps >= min_steps:
        return tc, tw
    if rows // min_steps >= sub:             # prefer splitting planes (mask stays put)
        tc = max(sub, ((rows // min_steps) // sub) * sub)
    elif tw == width and width // min_steps >= 128:
        tw = max(128, ((width // min_steps) // 128) * 128)
    return tc, tw


# ------------------------------- apply wrapper ------------------------------

def gridmask_apply(x, mask, offset=None):
    """Apply grid mask to x (n, c, h, w). mask: (h, w). offset: (h, w) or None."""
    n, c, h, w = x.shape
    p = n * c
    hw = h * w
    dt = x.dtype
    itemsize = np.dtype(dt).itemsize

    # Pack k planes per row so the lane dimension is wide (>= ~2048 elements).
    k = _pack_factor(p, hw)
    rows = p // k
    width = k * hw

    xf = x.reshape(rows, width)
    m_row = jnp.asarray(mask, dtype=jnp.float32).reshape(1, hw)
    m_row = jnp.tile(m_row, (1, k)) if k > 1 else m_row          # (1, width) f32

    vmem_cap = _vmem_capacity_bytes()
    target = _block_target_bytes(vmem_cap)
    tc, tw = _choose_tiles(rows, width, itemsize, target)
    tc, tw = _maybe_split_for_cores(rows, width, tc, tw, itemsize)

    grid_i = pl.cdiv(rows, tc)    # plane-row axis (inner)
    grid_j = pl.cdiv(width, tw)   # lane-chunk axis (outer -> mask block stays resident)
    grid = (grid_j, grid_i)

    x_spec = pl.BlockSpec((tc, tw), lambda j, i: (i, j))
    m_spec = pl.BlockSpec((1, tw), lambda j, i: (0, j))
    out_spec = pl.BlockSpec((tc, tw), lambda j, i: (i, j))

    if offset is None:
        kernel = _mask_kernel
        inputs = (xf, m_row)
        in_specs = [x_spec, m_spec]
        n_aux = 1
        flops = 2 * p * hw
    else:
        # Prefold offset * (1 - mask) once on the host side (tiny (h, w) array).
        off_f32 = jnp.asarray(offset, dtype=jnp.float32).reshape(1, hw)
        blend = off_f32 * (1.0 - jnp.asarray(mask, dtype=jnp.float32).reshape(1, hw))
        blend = jnp.tile(blend, (1, k)) if k > 1 else blend       # (1, width) f32
        kernel = _mask_offset_kernel
        inputs = (xf, m_row, blend)
        in_specs = [x_spec, m_spec, pl.BlockSpec((1, tw), lambda j, i: (0, j))]
        n_aux = 2
        flops = 3 * p * hw

    block_bytes = tc * tw * itemsize
    mask_block_bytes = tw * 4
    # Double-buffered x in + out, double-buffered mask/blend rows, plus slack.
    needed = 4 * block_bytes + 2 * n_aux * mask_block_bytes + (2 << 20)
    vmem_limit = int(min(max(needed, 16 << 20), vmem_cap * 3 // 4))

    bytes_accessed = 2 * p * hw * itemsize + n_aux * width * 4

    out = pl.pallas_call(
        kernel,
        out_shape=jax.ShapeDtypeStruct((rows, width), dt),
        grid_spec=pltpu.PrefetchScalarGridSpec(
            num_scalar_prefetch=0,
            grid=grid,
            in_specs=in_specs,
            out_specs=out_spec,
        ),
        compiler_params=pltpu.CompilerParams(
            dimension_semantics=("parallel", "parallel"),
            vmem_limit_bytes=vmem_limit),
        cost_estimate=pl.CostEstimate(
            flops=flops, transcendentals=0, bytes_accessed=bytes_accessed),
        input_output_aliases={0: 0},   # out aliases x -> no extra N*C*H*W allocation
    )(*inputs)

    return out.reshape(n, c, h, w)


# --------------------------- Host-side mask build ---------------------------

def build_gridmask(h, w, *, use_h=True, use_w=True, rotate=1, ratio=0.5,
                   mode=0, rng=None):
    """Replicates the numpy mask construction of GridMask.forward (rotation=0 case)."""
    if rng is None:
        rng = np.random.RandomState(0)
    hh = int(1.5 * h)
    ww = int(1.5 * w)
    d = rng.randint(2, h)
    l = min(max(int(d * ratio + 0.5), 1), d - 1)
    mask = np.ones((hh, ww), np.float32)
    st_h = rng.randint(d)
    st_w = rng.randint(d)
    if use_h:
        for i in range(hh // d):
            s = d * i + st_h
            t = min(s + l, hh)
            mask[s:t, :] *= 0
    if use_w:
        for i in range(ww // d):
            s = d * i + st_w
            t = min(s + l, ww)
            mask[:, s:t] *= 0
    r = rng.randint(rotate)  # rotate=1 -> r == 0 -> no rotation needed
    # TODO(synk): rotate>1 requires PIL-style image rotation; not supported here.
    assert r == 0, "rotate>1 (PIL rotation) not supported in this synthetic kernel"
    mask = mask[(hh - h) // 2:(hh - h) // 2 + h, (ww - w) // 2:(ww - w) // 2 + w]
    if mode == 1:
        mask = 1.0 - mask
    return jnp.asarray(mask.copy(), dtype=jnp.float32)


class GridMaskPallas:
    """JAX/Pallas equivalent of the PyTorch GridMask module (training forward).

    Note: prob gate and mask randomness use host-side numpy RNG (as in the original
    module), so this wrapper is not jit/trace-safe by design.
    """

    def __init__(self, use_h, use_w, rotate=1, offset=False, ratio=0.5,
                 mode=0, prob=1.0):
        self.use_h = use_h
        self.use_w = use_w
        self.rotate = rotate
        self.offset = offset
        self.ratio = ratio
        self.mode = mode
        self.st_prob = prob
        self.prob = prob
        self.training = True
        self._rng = np.random.RandomState(0)  # deterministic "randomness"

    def set_prob(self, epoch, max_epoch):
        self.prob = self.st_prob * epoch / max_epoch

    def __call__(self, x):
        if self._rng.rand() > self.prob or not self.training:
            return x
        n, c, h, w = x.shape
        mask = build_gridmask(h, w, use_h=self.use_h, use_w=self.use_w,
                              rotate=self.rotate, ratio=self.ratio,
                              mode=self.mode, rng=self._rng)
        off = None
        if self.offset:
            off = jnp.asarray(
                2.0 * (self._rng.rand(h, w) - 0.5), dtype=jnp.float32)
        return gridmask_apply(x, mask, off)


# ---------------------------------- main ------------------------------------

if __name__ == "__main__":
    key = jax.random.PRNGKey(0)
    n, c, h, w = 2, 4, 16, 16
    x = jax.random.normal(key, (n, c, h, w), dtype=jnp.float32)
    x_np = np.asarray(x)  # snapshot for references (output aliases input)

    # 1) Module path, no offset.
    gm = GridMaskPallas(use_h=True, use_w=True, rotate=1, offset=False,
                        ratio=0.5, mode=0, prob=1.0)
    y = jax.block_until_ready(gm(x))

    rng_ref = np.random.RandomState(0)
    _ = rng_ref.rand()  # mirrors the prob draw inside __call__
    mask_ref = np.asarray(build_gridmask(h, w, rng=rng_ref))
    y_ref = (x_np.reshape(n * c, h, w) * mask_ref).reshape(n, c, h, w)
    assert np.allclose(np.asarray(y), y_ref, atol=1e-6), "mismatch vs reference"

    # 2) Module path, offset blend.
    gm_off = GridMaskPallas(use_h=True, use_w=True, rotate=1, offset=True,
                            ratio=0.5, mode=0, prob=1.0)
    y2 = jax.block_until_ready(gm_off(x))
    rng_ref2 = np.random.RandomState(0)
    _ = rng_ref2.rand()
    mask_ref2 = np.asarray(build_gridmask(h, w, rng=rng_ref2))
    off_ref2 = 2.0 * (rng_ref2.rand(h, w) - 0.5)
    y2_ref = (x_np.reshape(n * c, h, w) * mask_ref2
              + off_ref2 * (1.0 - mask_ref2)).reshape(n, c, h, w)
    assert np.allclose(np.asarray(y2), y2_ref, atol=1e-5), "offset mismatch"

    # 3) Direct apply with more planes (exercises plane-packing / multi-row grid).
    key2 = jax.random.PRNGKey(1)
    x_big = jax.random.normal(key2, (2, 16, 16, 16), dtype=jnp.float32)
    x_big_np = np.asarray(x_big)
    mask_fixed = jnp.asarray(
        (np.arange(16 * 16).reshape(16, 16) % 3 == 0).astype(np.float32))
    y_big = jax.block_until_ready(gridmask_apply(x_big, mask_fixed))
    y_big_ref = x_big_np * np.asarray(mask_fixed)[None, None]
    assert np.allclose(np.asarray(y_big), y_big_ref, atol=1e-6), "multi-block mismatch"

    # 4) bf16 input (exercises f32-compute + cast-back path; mask is 0/1 so exact).
    x_bf = jnp.asarray(x_np, dtype=jnp.bfloat16)
    x_bf_np = np.asarray(x_bf, dtype=np.float32)
    y_bf = jax.block_until_ready(gridmask_apply(x_bf, jnp.asarray(mask_ref)))
    y_bf_ref = x_bf_np.reshape(n * c, h, w) * mask_ref
    assert np.allclose(np.asarray(y_bf, dtype=np.float32).reshape(n * c, h, w),
                       y_bf_ref, atol=1e-6), "bf16 mismatch"

    print("KERNEL_OK")
</pallas_src>

<mosaic_0001>
module attributes {stable_mosaic.version = 11 : i64} {
  func.func @_mask_kernel(%arg0: i32, %arg1: i32, %arg2: memref<1x2048xf32, #tpu.memory_space<vmem>>, %arg3: memref<1x2048xf32, #tpu.memory_space<vmem>>, %arg4: memref<1x2048xf32, #tpu.memory_space<vmem>>) attributes {dimension_semantics = [#tpu.dimension_semantics<parallel>, #tpu.dimension_semantics<parallel>], iteration_bounds = array<i64: 1, 1>, scalar_prefetch = 0 : i64, scratch_operands = 0 : i64, tpu.core_type = #tpu.core_type<tc>, window_params = [{transform_indices = @transform_0, window_bounds = array<i64: 1, 2048>}, {transform_indices = @transform_1, window_bounds = array<i64: 1, 2048>}, {transform_indices = @transform_2, window_bounds = array<i64: 1, 2048>}]} {
    %c0 = arith.constant 0 : index
    %c0_0 = arith.constant 0 : index
    %0 = vector.load %arg2[%c0, %c0_0] : memref<1x2048xf32, #tpu.memory_space<vmem>>, vector<1x2048xf32>
    %c0_1 = arith.constant 0 : index
    %c0_2 = arith.constant 0 : index
    %1 = vector.load %arg3[%c0_1, %c0_2] : memref<1x2048xf32, #tpu.memory_space<vmem>>, vector<1x2048xf32>
    %2 = arith.mulf %0, %1 : vector<1x2048xf32>
    %c0_3 = arith.constant 0 : index
    %c0_4 = arith.constant 0 : index
    %3 = vector.load %arg4[%c0_3, %c0_4] : memref<1x2048xf32, #tpu.memory_space<vmem>>, vector<1x2048xf32>
    tpu.vector_store %arg4[%c0_3, %c0_4], %2 {strides = array<i32>} : memref<1x2048xf32, #tpu.memory_space<vmem>>, vector<1x2048xf32>,
    return
  }
  func.func @transform_0(%arg0: i32, %arg1: i32) -> (i32, i32) {
    %c0_i32 = arith.constant 0 : i32
    return %arg1, %arg0 : i32, i32
  }
  func.func @transform_1(%arg0: i32, %arg1: i32) -> (i32, i32) {
    %c0_i32 = arith.constant 0 : i32
    %c0_i32_0 = arith.constant 0 : i32
    return %c0_i32, %arg0 : i32, i32
  }
  func.func @transform_2(%arg0: i32, %arg1: i32) -> (i32, i32) {
    %c0_i32 = arith.constant 0 : i32
    return %arg1, %arg0 : i32, i32
  }
}

</mosaic_0001>

<llo_original>
// kernel: tpu_custom_call.1
$region0: #{tpu_custom_call.1}
  #allocation0 [shape = 'u32[]', space=smem, size = 0x4, offset = 0x4, fixed_abs, tag = 'smem constant byte address 0x4 - core index']
  #allocation1 [shape = 'u32[72,128]{1,0:T(1,128)}', space=vmem, size = 0x9000, scoped, tag = 'internal scratch']
  %s0 = inlined_call_operand.hbm [shape: f32[1,2048], index: 0, kind: input, shape index: {}, may-alias: {0,2}]
  %s1 = inlined_call_operand.vmem [shape: f32[1,2048], index: 1, kind: input, shape index: {}]
  %s2 = inlined_call_operand.hbm [shape: f32[1,2048], index: 2, kind: output, shape index: {}, may-alias: {0,2}]
  %s3 = sld [smem:[#allocation0]]
  $region22: #{tpu_custom_call.1} parent=0
    _
  %s5 = ssub.s32 1, %s3
  %s6 = scalar_select 0, %s5, %s3
  $region1: #{tpu_custom_call.1} parent=0
    #allocation2 [shape = 'u8[8192]{0}', space=vmem, size = 0x2000, scoped, tag = 'input window, operand 0, single buffered']
    #allocation3 [shape = 's32[1]{0}', space=sflag, size = 0x4, scoped, tag = 'scoped memory for tpu_custom_call.1']
    #allocation4 [shape = 's32[1]{0}', space=sflag, size = 0x4, scoped, tag = 'scoped memory for tpu_custom_call.1']
    #allocation5 [shape = 'u8[8192]{0}', space=vmem, size = 0x2000, scoped, tag = 'output window, operand 0, single buffered']
    %7 = vsyncpa [#allocation3], 0
    %8 = vsyncpa [#allocation4], 0
    // Predicated region
    $region2: #{tpu_custom_call.1} parent=1 // pred_check
      _
    $region3: #{tpu_custom_call.1} parent=1 // pred_check_branch
      %10 = sbr.rel (0) target = $region5
    $region4: #{tpu_custom_call.1} parent=1 // pred_region
      %12 = vsyncadd [#allocation3], 0
      %s14 = sshll.u32 %s0, 4
      %s15 = int_to_ptr.hbm [resolvable:$true] %s14
      %s16 = sshll.u32 [#allocation2], 4
      %s17 = int_to_ptr.vmem [resolvable:$true] %s16
      %19 = dma.hbm_to_vmem [thread:$0]  %s15, 256, %s17, [#allocation3]
    $region5: #{tpu_custom_call.1} parent=1 // pred_fallthru
      _
    // Predicated region
    $region6: #{tpu_custom_call.1} parent=1 // pred_check
      _
    $region7: #{tpu_custom_call.1} parent=1 // pred_check_branch
      %21 = sbr.rel (0) target = $region9
    $region8: #{tpu_custom_call.1} parent=1 // pred_region
      _
    $region9: #{tpu_custom_call.1} parent=1 // pred_fallthru
      _
    // Predicated region
    $region10: #{tpu_custom_call.1} parent=1 // pred_check
      _
    $region11: #{tpu_custom_call.1} parent=1 // pred_check_branch
      %23 = sbr.rel (0) target = $region13
    $region12: #{tpu_custom_call.1} parent=1 // pred_region
      %25 = dma.done [#allocation3], 256
    $region13: #{tpu_custom_call.1} parent=1 // pred_fallthru
      _
    %v26 = vld [vmem:[#allocation2] sm:$0xff]
    %v27 = vld [vmem:[#allocation2 + $0x8] sm:$0xff]
    %v28 = vld [vmem:[%s1] sm:$0xff]
    %v29 = vld [vmem:[%s1 + $0x8] sm:$0xff]
    %v30 = vmul.f32 %v26, %v28
    %v31 = vmul.f32 %v27, %v29
    %32 = vst [vmem:[#allocation5] sm:$0xff] %v30
    %33 = vst [vmem:[#allocation5 + $0x8] sm:$0xff] %v31
    // Predicated region
    $region14: #{tpu_custom_call.1} parent=1 // pred_check
      _
    $region15: #{tpu_custom_call.1} parent=1 // pred_check_branch
      %35 = sbr.rel (0) target = $region17
    $region16: #{tpu_custom_call.1} parent=1 // pred_region
      %37 = vsyncadd [#allocation4], 0
      %s39 = sshll.u32 [#allocation5], 4
      %s40 = int_to_ptr.vmem [resolvable:$true] %s39
      %s41 = sshll.u32 %s2, 4
      %s42 = int_to_ptr.hbm [resolvable:$true] %s41
      %44 = dma.vmem_to_hbm [thread:$0]  %s40, 256, %s42, [#allocation4]
    $region17: #{tpu_custom_call.1} parent=1 // pred_fallthru
      _
    // Predicated region
    $region18: #{tpu_custom_call.1} parent=1 // pred_check
      _
    $region19: #{tpu_custom_call.1} parent=1 // pred_check_branch
      %46 = sbr.rel (0) target = $region21
    $region20: #{tpu_custom_call.1} parent=1 // pred_region
      %48 = dma.done [#allocation4], 256
    $region21: #{tpu_custom_call.1} parent=1 // pred_fallthru
      _
    %49 = vsyncpa [#allocation3], 1
    %50 = vsyncpa [#allocation4], 1

</llo_original>
